<compile_context>
chip_gen: v7x
topology: tpu7x:2x2x1
jax: 0.10.0
libtpu: 0.0.40
codegen_flags: <defaults>
</compile_context>

<pallas_src>
import functools

import jax
import jax.numpy as jnp
import numpy as np
from jax.experimental import pallas as pl
from jax.experimental.pallas import tpu as pltpu

_VMEM_LIMIT = 64 * 1024 * 1024  # fits v5e/v6e/v7x physical VMEM


# ----------------------------------------------------------------------------
# Tiling helper
# ----------------------------------------------------------------------------
def _pick_tile(dim, target, align):
    """Largest tile <= target that is `align`-aligned and divides dim, else dim."""
    if dim <= target:
        return dim
    t = (min(target, dim) // align) * align
    while t >= align:
        if dim % t == 0:
            return t
        t -= align
    return dim


# ----------------------------------------------------------------------------
# Pallas kernels
# ----------------------------------------------------------------------------
def _linear_kernel(relu, fuse_ln, eps, x_ref, w_ref, b_ref, *rest):
    """Tiled matmul with bias; optional ReLU; optional fused residual+LayerNorm.

    x: (tm, tk) f32/bf16, w: (tk, tn) bf16, b: (1, tn) f32.
    If fuse_ln: residual (tm, tn), gamma (1, tn), beta (1, tn) follow.
    """
    if fuse_ln:
        r_ref, g_ref, bt_ref, o_ref, acc_ref = rest
    else:
        o_ref, acc_ref = rest

    k = pl.program_id(2)

    @pl.when(k == 0)
    def _init():
        acc_ref[...] = jnp.zeros_like(acc_ref)

    acc_ref[...] += jnp.dot(
        x_ref[...].astype(jnp.bfloat16), w_ref[...],
        preferred_element_type=jnp.float32)

    @pl.when(k == pl.num_programs(2) - 1)
    def _finish():
        y = acc_ref[...] + b_ref[...]
        if relu:
            y = jnp.maximum(y, 0.0)
        if fuse_ln:
            y = y + r_ref[...]
            mu = jnp.mean(y, axis=-1, keepdims=True)
            var = jnp.mean((y - mu) * (y - mu), axis=-1, keepdims=True)
            y = (y - mu) * jax.lax.rsqrt(var + eps) * g_ref[...] + bt_ref[...]
        o_ref[...] = y.astype(o_ref.dtype)


def _mha_out_kernel(n_heads, d_k, d_v, scale, causal, eps,
                    q_ref, k_ref, v_ref, wo_ref, bo_ref, r_ref, g_ref, bt_ref,
                    o_ref):
    """One batch per grid step; all heads packed along lanes.

    q: (1,Lq,H*dk) bf16, k: (1,Lk,H*dk) bf16, v: (1,Lk,H*dv) bf16.
    Fused epilogue: ctx @ wo + bo, + residual, LayerNorm -> o: (1,Lq,D) f32.
    Causal mask generated in-kernel; scores/softmax stay in the f32 domain.
    """
    q = q_ref[0]
    k = k_ref[0]
    v = v_ref[0]
    Lq = q.shape[0]
    Lk = k.shape[0]

    if causal:
        qi = jax.lax.broadcasted_iota(jnp.int32, (Lq, Lk), 0)
        ki = jax.lax.broadcasted_iota(jnp.int32, (Lq, Lk), 1)
        neg = jnp.where(ki > qi, jnp.float32(-1e9), jnp.float32(0.0))

    ctx = []
    for h in range(n_heads):  # static unroll; per-head MXU work is serial anyway
        qh = q[:, h * d_k:(h + 1) * d_k]
        kh = k[:, h * d_k:(h + 1) * d_k]
        vh = v[:, h * d_v:(h + 1) * d_v]
        s = jnp.dot(qh, kh.T, preferred_element_type=jnp.float32) * scale
        if causal:
            s = s + neg
        m = jnp.max(s, axis=-1, keepdims=True)
        p = jnp.exp(s - m)
        p = p * pl.reciprocal(jnp.sum(p, axis=-1, keepdims=True), approx=True)
        ctx.append(jnp.dot(p.astype(jnp.bfloat16), vh,
                           preferred_element_type=jnp.float32))
    ctx = jnp.concatenate(ctx, axis=-1).astype(jnp.bfloat16)   # (Lq, H*dv)

    # Fused output projection + residual add + LayerNorm (lane-dense store).
    y = jnp.dot(ctx, wo_ref[...], preferred_element_type=jnp.float32) + bo_ref[...]
    y = y + r_ref[0]
    mu = jnp.mean(y, axis=-1, keepdims=True)
    var = jnp.mean((y - mu) * (y - mu), axis=-1, keepdims=True)
    y = (y - mu) * jax.lax.rsqrt(var + eps) * g_ref[...] + bt_ref[...]
    o_ref[0] = y.astype(o_ref.dtype)


# ----------------------------------------------------------------------------
# Pallas wrappers
# ----------------------------------------------------------------------------
def linear(x, w, b, relu=False, residual=None, ln_g=None, ln_b=None, eps=1e-5,
           out_dtype=jnp.float32, tm_target=256, tn_target=512, tk_target=512):
    """y = x @ w + b [; relu] [; LayerNorm(y + residual)].   x:(M,K), w:(K,N) bf16."""
    M, K = x.shape
    N = w.shape[1]
    fuse_ln = residual is not None

    # bf16 arrays pack 16 rows per sublane tile -> align M-tile to 16 in that case.
    align_m = 16 if (x.dtype == jnp.bfloat16 or out_dtype == jnp.bfloat16) else 8
    tm = _pick_tile(M, tm_target, align_m)
    tk = _pick_tile(K, tk_target, 128)
    # LayerNorm needs the whole row -> full-N output tile when fused.
    tn = N if fuse_ln else _pick_tile(N, tn_target, 128)
    grid = (M // tm, N // tn, K // tk)

    in_specs = [
        pl.BlockSpec((tm, tk), lambda i, j, k: (i, k)),
        pl.BlockSpec((tk, tn), lambda i, j, k: (k, j)),
        pl.BlockSpec((1, tn), lambda i, j, k: (0, j)),
    ]
    args = [x, w, b]
    if fuse_ln:
        in_specs += [
            pl.BlockSpec((tm, tn), lambda i, j, k: (i, j)),
            pl.BlockSpec((1, tn), lambda i, j, k: (0, j)),
            pl.BlockSpec((1, tn), lambda i, j, k: (0, j)),
        ]
        args += [residual, ln_g, ln_b]

    return pl.pallas_call(
        functools.partial(_linear_kernel, relu, fuse_ln, eps),
        out_shape=jax.ShapeDtypeStruct((M, N), out_dtype),
        grid_spec=pltpu.PrefetchScalarGridSpec(
            num_scalar_prefetch=0,
            grid=grid,
            in_specs=in_specs,
            out_specs=pl.BlockSpec((tm, tn), lambda i, j, k: (i, j)),
            scratch_shapes=[pltpu.VMEM((tm, tn), jnp.float32)]),
        compiler_params=pltpu.CompilerParams(
            dimension_semantics=("parallel", "parallel", "arbitrary"),
            vmem_limit_bytes=_VMEM_LIMIT),
    )(*args)


def mha_block(q, k, v, wo, bo, residual, ln_g, ln_b, n_heads, d_k, d_v, causal,
              eps=1e-5):
    """Attention + fused output projection + Add&LayerNorm.

    q:(B,Lq,H*dk) bf16, k:(B,Lk,H*dk) bf16, v:(B,Lk,H*dv) bf16,
    residual:(B,Lq,D) f32  ->  (B,Lq,D) f32.
    """
    B, Lq, HDk = q.shape
    Lk = k.shape[1]
    HDv = v.shape[2]
    D = wo.shape[1]
    scale = 1.0 / float(np.sqrt(d_k))
    return pl.pallas_call(
        functools.partial(_mha_out_kernel, n_heads, d_k, d_v, scale, causal, eps),
        out_shape=jax.ShapeDtypeStruct((B, Lq, D), jnp.float32),
        grid=(B,),
        in_specs=[
            pl.BlockSpec((1, Lq, HDk), lambda b: (b, 0, 0)),
            pl.BlockSpec((1, Lk, HDk), lambda b: (b, 0, 0)),
            pl.BlockSpec((1, Lk, HDv), lambda b: (b, 0, 0)),
            pl.BlockSpec((HDv, D), lambda b: (0, 0)),
            pl.BlockSpec((1, D), lambda b: (0, 0)),
            pl.BlockSpec((1, Lq, D), lambda b: (b, 0, 0)),
            pl.BlockSpec((1, D), lambda b: (0, 0)),
            pl.BlockSpec((1, D), lambda b: (0, 0)),
        ],
        out_specs=pl.BlockSpec((1, Lq, D), lambda b: (b, 0, 0)),
        compiler_params=pltpu.CompilerParams(
            dimension_semantics=("parallel",),
            vmem_limit_bytes=_VMEM_LIMIT),
    )(q, k, v, wo, bo, residual, ln_g, ln_b)


# ----------------------------------------------------------------------------
# Transformer blocks (thin glue in JAX, all heavy math inside Pallas)
# ----------------------------------------------------------------------------
def self_attention_block(x, p, n_heads, d_k, d_v, causal, ln_g, ln_b):
    B, L, D = x.shape
    hk = n_heads * d_k
    hv = n_heads * d_v
    x2 = x.reshape(B * L, D)
    # Fused Q|K|V projection, bf16 output -> half the HBM read traffic downstream.
    qkv = linear(x2, p["w_qkv"], p["b_qkv"], out_dtype=jnp.bfloat16)
    q = qkv[:, :hk].reshape(B, L, hk)
    k = qkv[:, hk:2 * hk].reshape(B, L, hk)
    v = qkv[:, 2 * hk:].reshape(B, L, hv)
    # Attention + wo projection + Add&LayerNorm fused in one kernel.
    return mha_block(q, k, v, p["wo"], p["bo"], x, ln_g, ln_b,
                     n_heads, d_k, d_v, causal)


def cross_attention_block(x_q, x_kv, p, n_heads, d_k, d_v, ln_g, ln_b):
    B, Lq, D = x_q.shape
    Lk = x_kv.shape[1]
    hk = n_heads * d_k
    hv = n_heads * d_v
    q = linear(x_q.reshape(B * Lq, D), p["wq"], p["bq"],
               out_dtype=jnp.bfloat16).reshape(B, Lq, hk)
    kv = linear(x_kv.reshape(B * Lk, D), p["w_kv"], p["b_kv"],
                out_dtype=jnp.bfloat16)                           # fused K|V
    k = kv[:, :hk].reshape(B, Lk, hk)
    v = kv[:, hk:].reshape(B, Lk, hv)
    return mha_block(q, k, v, p["wo"], p["bo"], x_q, ln_g, ln_b,
                     n_heads, d_k, d_v, causal=False)


def ffn_block(x, p, ln_g, ln_b):
    B, L, D = x.shape
    x2 = x.reshape(B * L, D)
    h = linear(x2, p["w1"], p["b1"], relu=True, out_dtype=jnp.bfloat16)
    out = linear(h, p["w2"], p["b2"], residual=x2, ln_g=ln_g, ln_b=ln_b)
    return out.reshape(B, L, D)


def encoder_layer(x, p, n_heads, d_k, d_v):
    x = self_attention_block(x, p["self_attn"], n_heads, d_k, d_v, False,
                             p["ln1_g"], p["ln1_b"])
    x = ffn_block(x, p["ffn"], p["ln2_g"], p["ln2_b"])
    return x


def decoder_layer(x, enc_out, p, n_heads, d_k, d_v):
    x = self_attention_block(x, p["self_attn"], n_heads, d_k, d_v, True,
                             p["ln1_g"], p["ln1_b"])
    x = cross_attention_block(x, enc_out, p["cross_attn"], n_heads, d_k, d_v,
                              p["ln2_g"], p["ln2_b"])
    x = ffn_block(x, p["ffn"], p["ln3_g"], p["ln3_b"])
    return x


@functools.lru_cache(maxsize=None)
def _sinusoidal_pe_np(length, d_model):
    pos = np.arange(length)[:, None].astype(np.float32)
    i = np.arange(d_model)[None, :].astype(np.float32)
    angle = pos / np.power(10000.0, (2.0 * np.floor(i / 2.0)) / d_model)
    pe = np.zeros((length, d_model), np.float32)
    pe[:, 0::2] = np.sin(angle[:, 0::2])
    pe[:, 1::2] = np.cos(angle[:, 1::2])
    return pe


def sinusoidal_pe(length, d_model):
    return jnp.asarray(_sinusoidal_pe_np(length, d_model))


def transformer_forward(params, enc_inputs, dec_inputs, n_heads, d_k, d_v):
    B, Ls, _ = enc_inputs.shape
    _, Lt, _ = dec_inputs.shape
    d_model = params["enc_embed"]["w"].shape[1]

    # ---- Encoder ----
    x = linear(enc_inputs.reshape(B * Ls, -1),
               params["enc_embed"]["w"], params["enc_embed"]["b"]).reshape(B, Ls, d_model)
    x = x + sinusoidal_pe(Ls, d_model)[None]
    for lp in params["enc_layers"]:
        x = encoder_layer(x, lp, n_heads, d_k, d_v)
    enc_outputs = x

    # ---- Decoder ----
    y = linear(dec_inputs.reshape(B * Lt, -1),
               params["dec_embed"]["w"], params["dec_embed"]["b"]).reshape(B, Lt, d_model)
    y = y + sinusoidal_pe(Lt, d_model)[None]
    for lp in params["dec_layers"]:
        y = decoder_layer(y, enc_outputs, lp, n_heads, d_k, d_v)
    dec_outputs = y

    return enc_outputs, dec_outputs


# ----------------------------------------------------------------------------
# Deterministic parameter initialization (weights stored bf16 for the MXU)
# ----------------------------------------------------------------------------
def _w(key, shape):
    return (jax.random.normal(key, shape, jnp.float32) * 0.02).astype(jnp.bfloat16)


def _self_attn_params(key, d_model, n_heads, d_k, d_v):
    k1, k2 = jax.random.split(key)
    n_qkv = n_heads * (2 * d_k + d_v)
    return dict(
        w_qkv=_w(k1, (d_model, n_qkv)),
        b_qkv=jnp.zeros((1, n_qkv), jnp.float32),
        wo=_w(k2, (n_heads * d_v, d_model)),
        bo=jnp.zeros((1, d_model), jnp.float32),
    )


def _cross_attn_params(key, d_model, n_heads, d_k, d_v):
    k1, k2, k3 = jax.random.split(key, 3)
    n_kv = n_heads * (d_k + d_v)
    return dict(
        wq=_w(k1, (d_model, n_heads * d_k)),
        bq=jnp.zeros((1, n_heads * d_k), jnp.float32),
        w_kv=_w(k2, (d_model, n_kv)),
        b_kv=jnp.zeros((1, n_kv), jnp.float32),
        wo=_w(k3, (n_heads * d_v, d_model)),
        bo=jnp.zeros((1, d_model), jnp.float32),
    )


def _ffn_params(key, d_model, d_ff):
    k1, k2 = jax.random.split(key)
    return dict(
        w1=_w(k1, (d_model, d_ff)), b1=jnp.zeros((1, d_ff), jnp.float32),
        w2=_w(k2, (d_ff, d_model)), b2=jnp.zeros((1, d_model), jnp.float32),
    )


def init_params(key, src_input_size, tgt_input_size, d_model, d_ff, d_k, d_v,
                n_heads, n_layers):
    keys = jax.random.split(key, 2 + 2 * n_layers)
    ones = lambda: jnp.ones((1, d_model), jnp.float32)
    zeros = lambda: jnp.zeros((1, d_model), jnp.float32)
    params = dict(
        enc_embed=dict(w=_w(keys[0], (src_input_size, d_model)), b=zeros()),
        dec_embed=dict(w=_w(keys[1], (tgt_input_size, d_model)), b=zeros()),
        enc_layers=[], dec_layers=[],
    )
    for l in range(n_layers):
        ka, kf = jax.random.split(keys[2 + l])
        params["enc_layers"].append(dict(
            self_attn=_self_attn_params(ka, d_model, n_heads, d_k, d_v),
            ffn=_ffn_params(kf, d_model, d_ff),
            ln1_g=ones(), ln1_b=zeros(),
            ln2_g=ones(), ln2_b=zeros(),
        ))
    for l in range(n_layers):
        ks, kc, kf = jax.random.split(keys[2 + n_layers + l], 3)
        params["dec_layers"].append(dict(
            self_attn=_self_attn_params(ks, d_model, n_heads, d_k, d_v),
            cross_attn=_cross_attn_params(kc, d_model, n_heads, d_k, d_v),
            ffn=_ffn_params(kf, d_model, d_ff),
            ln1_g=ones(), ln1_b=zeros(),
            ln2_g=ones(), ln2_b=zeros(),
            ln3_g=ones(), ln3_b=zeros(),
        ))
    return params


# ----------------------------------------------------------------------------
if __name__ == "__main__":
    B, src_len, tgt_len = 2, 8, 8
    src_input_size, tgt_input_size = 4, 4
    d_model, d_ff, d_k, d_v = 32, 64, 8, 8
    n_heads, n_layers = 4, 2

    key = jax.random.PRNGKey(0)
    kp, ke, kd = jax.random.split(key, 3)
    params = init_params(kp, src_input_size, tgt_input_size, d_model, d_ff,
                         d_k, d_v, n_heads, n_layers)

    enc_inputs = jax.random.normal(ke, (B, src_len, src_input_size), jnp.float32)
    dec_inputs = jax.random.normal(kd, (B, tgt_len, tgt_input_size), jnp.float32)

    enc_out, dec_out = transformer_forward(params, enc_inputs, dec_inputs,
                                           n_heads, d_k, d_v)
    jax.block_until_ready((enc_out, dec_out))

    assert enc_out.shape == (B, src_len, d_model)
    assert dec_out.shape == (B, tgt_len, d_model)
    assert bool(jnp.all(jnp.isfinite(enc_out))) and bool(jnp.all(jnp.isfinite(dec_out)))
    print("KERNEL_OK")
</pallas_src>

<mosaic_0001>
module attributes {stable_mosaic.version = 11 : i64} {
  func.func @_linear_kernel(%arg0: i32, %arg1: i32, %arg2: i32, %arg3: memref<16x4xf32, #tpu.memory_space<vmem>>, %arg4: memref<4x32xbf16, #tpu.memory_space<vmem>>, %arg5: memref<1x32xf32, #tpu.memory_space<vmem>>, %arg6: memref<16x32xf32, #tpu.memory_space<vmem>>, %arg7: memref<16x32xf32, #tpu.memory_space<vmem>>) attributes {dimension_semantics = [#tpu.dimension_semantics<parallel>, #tpu.dimension_semantics<parallel>, #tpu.dimension_semantics<arbitrary>], iteration_bounds = array<i64: 1, 1, 1>, scalar_prefetch = 0 : i64, scratch_operands = 1 : i64, tpu.core_type = #tpu.core_type<tc>, window_params = [{transform_indices = @transform_0, window_bounds = array<i64: 16, 4>}, {transform_indices = @transform_1, window_bounds = array<i64: 4, 32>}, {transform_indices = @transform_2, window_bounds = array<i64: 1, 32>}, {transform_indices = @transform_3, window_bounds = array<i64: 16, 32>}]} {
    %c0_i32 = arith.constant 0 : i32
    %0 = arith.cmpi eq, %arg2, %c0_i32 : i32
    %1 = arith.extui %0 : i1 to i32
    %c0_i32_0 = arith.constant 0 : i32
    %2 = arith.cmpi ne, %1, %c0_i32_0 : i32
    scf.if %2 {
      %cst_10 = arith.constant 0.000000e+00 : f32
      %13 = vector.broadcast %cst_10 : f32 to vector<16x32xf32>
      %c0_11 = arith.constant 0 : index
      %c0_12 = arith.constant 0 : index
      %14 = vector.load %arg7[%c0_11, %c0_12] : memref<16x32xf32, #tpu.memory_space<vmem>>, vector<16x32xf32>
      tpu.vector_store %arg7[%c0_11, %c0_12], %13 {strides = array<i32>} : memref<16x32xf32, #tpu.memory_space<vmem>>, vector<16x32xf32>,
    } else {
    }
    %c0 = arith.constant 0 : index
    %c0_1 = arith.constant 0 : index
    %3 = vector.load %arg7[%c0, %c0_1] : memref<16x32xf32, #tpu.memory_space<vmem>>, vector<16x32xf32>
    %c0_2 = arith.constant 0 : index
    %c0_3 = arith.constant 0 : index
    %4 = vector.load %arg3[%c0_2, %c0_3] : memref<16x4xf32, #tpu.memory_space<vmem>>, vector<16x4xf32>
    %5 = arith.truncf %4 : vector<16x4xf32> to vector<16x4xbf16>
    %c0_4 = arith.constant 0 : index
    %c0_5 = arith.constant 0 : index
    %6 = vector.load %arg4[%c0_4, %c0_5] : memref<4x32xbf16, #tpu.memory_space<vmem>>, vector<4x32xbf16>
    %cst = arith.constant dense<0.000000e+00> : vector<16x32xf32>
    %7 = tpu.matmul %5, %6, %cst {dimension_numbers = #tpu.dot_dimension_numbers<[1], [0], [0], [1], [0, 0, 1, 1], [], []>} : vector<16x4xbf16>, vector<4x32xbf16>, vector<16x32xf32> -> vector<16x32xf32>
    %8 = arith.addf %3, %7 : vector<16x32xf32>
    %c0_6 = arith.constant 0 : index
    %c0_7 = arith.constant 0 : index
    %9 = vector.load %arg7[%c0_6, %c0_7] : memref<16x32xf32, #tpu.memory_space<vmem>>, vector<16x32xf32>
    tpu.vector_store %arg7[%c0_6, %c0_7], %8 {strides = array<i32>} : memref<16x32xf32, #tpu.memory_space<vmem>>, vector<16x32xf32>,
    %c0_i32_8 = arith.constant 0 : i32
    %10 = arith.cmpi eq, %arg2, %c0_i32_8 : i32
    %11 = arith.extui %10 : i1 to i32
    %c0_i32_9 = arith.constant 0 : i32
    %12 = arith.cmpi ne, %11, %c0_i32_9 : i32
    scf.if %12 {
      %c0_10 = arith.constant 0 : index
      %c0_11 = arith.constant 0 : index
      %13 = vector.load %arg7[%c0_10, %c0_11] : memref<16x32xf32, #tpu.memory_space<vmem>>, vector<16x32xf32>
      %c0_12 = arith.constant 0 : index
      %c0_13 = arith.constant 0 : index
      %14 = vector.load %arg5[%c0_12, %c0_13] : memref<1x32xf32, #tpu.memory_space<vmem>>, vector<1x32xf32>
      %15 = vector.broadcast %14 : vector<1x32xf32> to vector<16x32xf32>
      %16 = arith.addf %13, %15 : vector<16x32xf32>
      %c0_14 = arith.constant 0 : index
      %c0_15 = arith.constant 0 : index
      %17 = vector.load %arg6[%c0_14, %c0_15] : memref<16x32xf32, #tpu.memory_space<vmem>>, vector<16x32xf32>
      tpu.vector_store %arg6[%c0_14, %c0_15], %16 {strides = array<i32>} : memref<16x32xf32, #tpu.memory_space<vmem>>, vector<16x32xf32>,
    } else {
    }
    return
  }
  func.func @transform_0(%arg0: i32, %arg1: i32, %arg2: i32) -> (i32, i32) {
    %c0_i32 = arith.constant 0 : i32
    return %arg0, %arg2 : i32, i32
  }
  func.func @transform_1(%arg0: i32, %arg1: i32, %arg2: i32) -> (i32, i32) {
    %c0_i32 = arith.constant 0 : i32
    return %arg2, %arg1 : i32, i32
  }
  func.func @transform_2(%arg0: i32, %arg1: i32, %arg2: i32) -> (i32, i32) {
    %c0_i32 = arith.constant 0 : i32
    %c0_i32_0 = arith.constant 0 : i32
    return %c0_i32, %arg1 : i32, i32
  }
  func.func @transform_3(%arg0: i32, %arg1: i32, %arg2: i32) -> (i32, i32) {
    %c0_i32 = arith.constant 0 : i32
    return %arg0, %arg1 : i32, i32
  }
}

</mosaic_0001>

<llo_original>
// kernel: tpu_custom_call.1
$region0: #{tpu_custom_call.1}
  #allocation0 [shape = 'u32[]', space=smem, size = 0x4, offset = 0x4, fixed_abs, tag = 'smem constant byte address 0x4 - core index']
  #allocation1 [shape = 'u32[144,128]{1,0:T(1,128)}', space=vmem, size = 0x12000, scoped, tag = 'internal scratch']
  #allocation2 [shape = 'f32[16,32]{1,0:T(8,128)}', space=vmem, size = 0x2000, scoped, tag = 'scratch operand']
  %s0 = inlined_call_operand.hbm [shape: f32[16,4], index: 0, kind: input, shape index: {}]
  %s1 = inlined_call_operand.hbm [shape: bf16[4,32], index: 1, kind: input, shape index: {}]
  %s2 = inlined_call_operand.hbm [shape: f32[1,32], index: 2, kind: input, shape index: {}]
  %s3 = inlined_call_operand.hbm [shape: f32[16,32], index: 3, kind: output, shape index: {}]
  %s4 = sld [smem:[#allocation0]]
  $region42: #{tpu_custom_call.1} parent=0
    _
  %s6 = ssub.s32 1, %s4
  %s7 = scalar_select 0, %s6, %s4
  $region1: #{tpu_custom_call.1} parent=0
    #allocation3 [shape = 'u8[8192]{0}', space=vmem, size = 0x2000, scoped, tag = 'input window, operand 0, single buffered']
    #allocation4 [shape = 's32[1]{0}', space=sflag, size = 0x4, scoped, tag = 'scoped memory for tpu_custom_call.1']
    #allocation5 [shape = 's32[1]{0}', space=sflag, size = 0x4, scoped, tag = 'scoped memory for tpu_custom_call.1']
    #allocation6 [shape = 'u8[1024]{0}', space=vmem, size = 0x400, scoped, tag = 'input window, operand 1, single buffered']
    #allocation7 [shape = 's32[1]{0}', space=sflag, size = 0x4, scoped, tag = 'scoped memory for tpu_custom_call.1']
    #allocation8 [shape = 'u8[512]{0}', space=vmem, size = 0x400, scoped, tag = 'input window, operand 2, single buffered']
    #allocation9 [shape = 'u8[8192]{0}', space=vmem, size = 0x2000, scoped, tag = 'output window, operand 0, single buffered']
    %8 = vsyncpa [#allocation4], 0
    %9 = vsyncpa [#allocation7], 0
    %10 = vsyncpa [#allocation5], 0
    // Predicated region
    $region2: #{tpu_custom_call.1} parent=1 // pred_check
      _
    $region3: #{tpu_custom_call.1} parent=1 // pred_check_branch
      %12 = sbr.rel (0) target = $region5
    $region4: #{tpu_custom_call.1} parent=1 // pred_region
      %s14 = ssub.s32 256, 256
      %15 = vsyncadd [#allocation4], %s14
      %s16 = sshll.u32 [#allocation3], 4
      %s17 = int_to_ptr.vmem [resolvable:$true] %s16
      %22 = dma.hbm_to_vmem [thread:$0]  %s0, 256, %s17, [#allocation4], 128, 128, 8
    $region5: #{tpu_custom_call.1} parent=1 // pred_fallthru
      _
    // Predicated region
    $region6: #{tpu_custom_call.1} parent=1 // pred_check
      _
    $region7: #{tpu_custom_call.1} parent=1 // pred_check_branch
      %24 = sbr.rel (0) target = $region9
    $region8: #{tpu_custom_call.1} parent=1 // pred_region
      %s26 = ssub.s32 32, 32
      %27 = vsyncadd [#allocation7], %s26
      %s29 = sshll.u32 [#allocation6], 4
      %s30 = int_to_ptr.vmem [resolvable:$true] %s29
      %32 = dma.hbm_to_vmem [thread:$0]  %s1, 32, %s30, [#allocation7]
    $region9: #{tpu_custom_call.1} parent=1 // pred_fallthru
      _
    // Predicated region
    $region10: #{tpu_custom_call.1} parent=1 // pred_check
      _
    $region11: #{tpu_custom_call.1} parent=1 // pred_check_branch
      %34 = sbr.rel (0) target = $region13
    $region12: #{tpu_custom_call.1} parent=1 // pred_region
      %s36 = ssub.s32 16, 16
      %37 = vsyncadd [#allocation7], %s36
      %s39 = sshll.u32 [#allocation8], 4
      %s40 = int_to_ptr.vmem [resolvable:$true] %s39
      %42 = dma.hbm_to_vmem [thread:$0]  %s2, 16, %s40, [#allocation7]
    $region13: #{tpu_custom_call.1} parent=1 // pred_fallthru
      _
    // Predicated region
    $region14: #{tpu_custom_call.1} parent=1 // pred_check
      _
    $region15: #{tpu_custom_call.1} parent=1 // pred_check_branch
      %44 = sbr.rel (0) target = $region17
    $region16: #{tpu_custom_call.1} parent=1 // pred_region
      %45 = dma.done [#allocation4], 256
    $region17: #{tpu_custom_call.1} parent=1 // pred_fallthru
      _
    // Predicated region
    $region18: #{tpu_custom_call.1} parent=1 // pred_check
      _
    $region19: #{tpu_custom_call.1} parent=1 // pred_check_branch
      %47 = sbr.rel (0) target = $region21
    $region20: #{tpu_custom_call.1} parent=1 // pred_region
      %48 = dma.done [#allocation7], 32
    $region21: #{tpu_custom_call.1} parent=1 // pred_fallthru
      _
    // Predicated region
    $region22: #{tpu_custom_call.1} parent=1 // pred_check
      _
    $region23: #{tpu_custom_call.1} parent=1 // pred_check_branch
      %50 = sbr.rel (0) target = $region25
    $region24: #{tpu_custom_call.1} parent=1 // pred_region
      %51 = dma.done [#allocation7], 16
    $region25: #{tpu_custom_call.1} parent=1 // pred_fallthru
      _
    %p53 = scmp.eq.s32.totalorder 0, 0
    // Predicated region
    $region26: #{tpu_custom_call.1} parent=1 // pred_check
      %p54 = pneg %p53
    $region27: #{tpu_custom_call.1} parent=1 // pred_check_branch
      %56 = sbr.rel (%p54) target = $region29
    $region28: #{tpu_custom_call.1} parent=1 // pred_region
      %vm57 = vcmask 261120
      %58 = vst.msk [vmem:[#allocation2] sm:$0xff] %vm57, 0.0
      %59 = vst.msk [vmem:[#allocation2 + $0x8] sm:$0xff] %vm57, 0.0
    $region29: #{tpu_custom_call.1} parent=1 // pred_fallthru
      _
    %v60 = vld [vmem:[#allocation2] sm:$0xff]
    %v61 = vld [vmem:[#allocation2 + $0x8] sm:$0xff]
    %v62 = vld [vmem:[#allocation3] sm:$0xff]
    %v63 = vld [vmem:[#allocation3 + $0x8] sm:$0xff]
    %v64 = vpack.c.bf16 %v63, %v62
    %v65 = vld [vmem:[#allocation6] sm:$0x3]
    %vm66 = vcmask 31744
    %v68 = vsel %vm66, %v64, 0
    %vm70 = vcmask 1041408
    %v72 = vsel %vm70, %v65, 0
    %74 = vmatprep.subr.bf16.mxu0 0
    %75 = vmatpush1.bf16.msra.mxu0 %v72
    %76 = vmatprep.subr.bf16.mxu0 0
    %77 = vmatpush1.bf16.msra.mxu0 0
    %78 = vmatprep.subr.bf16.mxu0 0
    %79 = vmatpush1.bf16.msra.mxu0 0
    %80 = vmatprep.subr.bf16.mxu0 0
    %81 = vmatpush1.bf16.msra.mxu0 0
    %82 = vmatprep.subr.bf16.mxu0 0
    %83 = vmatpush1.bf16.msra.mxu0 0
    %84 = vmatprep.subr.bf16.mxu0 0
    %85 = vmatpush1.bf16.msra.mxu0 0
    %86 = vmatprep.subr.bf16.mxu0 0
    %87 = vmatpush1.bf16.msra.mxu0 0
    %88 = vmatprep.subr.bf16.mxu0 0
    %89 = vmatpush1.bf16.msra.mxu0 0
    %90 = vmatprep.subr.bf16.mxu0 0
    %91 = vmatpush1.bf16.msra.mxu0 0
    %92 = vmatprep.subr.bf16.mxu0 0
    %93 = vmatpush1.bf16.msra.mxu0 0
    %94 = vmatprep.subr.bf16.mxu0 0
    %95 = vmatpush1.bf16.msra.mxu0 0
    %96 = vmatprep.subr.bf16.mxu0 0
    %97 = vmatpush1.bf16.msra.mxu0 0
    %98 = vmatprep.subr.bf16.mxu0 0
    %99 = vmatpush1.bf16.msra.mxu0 0
    %100 = vmatprep.subr.bf16.mxu0 0
    %101 = vmatpush1.bf16.msra.mxu0 0
    %102 = vmatprep.subr.bf16.mxu0 0
    %103 = vmatpush1.bf16.msra.mxu0 0
    %104 = vmatprep.subr.bf16.mxu0 0
    %105 = vmatpush1.bf16.msra.mxu0 0
    %106 = vmatprep.mubr.bf16.mxu0 0
    %107 = vmatmul.mubr.bf16.gmra.mrb[0].mxu0 %v68
    %v108 = vpop.f32.mrb[0].mxu0
    %v109 = vadd.f32 0.0, %v108
    %v110 = vpop.f32.mrb[0].mxu0
    %v111 = vpop.f32.mrb[0].mxu0
    %v112 = vadd.f32 0.0, %v111
    %v113 = vpop.f32.mrb[0].mxu0
    %114 = vdwg.mxu0
    %v115 = vadd.f32 %v60, %v109
    %v116 = vadd.f32 %v61, %v112
    %vm117 = vcmask 261120
    %118 = vst.msk [vmem:[#allocation2] sm:$0xff] %vm117, %v115
    %119 = vst.msk [vmem:[#allocation2 + $0x8] sm:$0xff] %vm117, %v116
    // Predicated region
    $region30: #{tpu_custom_call.1} parent=1 // pred_check
      %p120 = pneg %p53
    $region31: #{tpu_custom_call.1} parent=1 // pred_check_branch
      %122 = sbr.rel (%p120) target = $region33
    $region32: #{tpu_custom_call.1} parent=1 // pred_region
      %v123 = vld [vmem:[#allocation2] sm:$0xff]
      %v124 = vld [vmem:[#allocation2 + $0x8] sm:$0xff]
      %v125 = vld [vmem:[#allocation8] sm:$0x1]
      %v127 = vlaneseq
      %v128 = vshrl.u32 %v127, 7
      %v129 = vsub.s32 0, %v128
      %v130 = vrot.slane %v125, %v129
      %v132 = vadd.f32 %v123, %v130
      %v133 = vadd.f32 %v124, %v130
      %134 = vst.msk [vmem:[#allocation9] sm:$0xff] %vm117, %v132
      %135 = vst.msk [vmem:[#allocation9 + $0x8] sm:$0xff] %vm117, %v133
    $region33: #{tpu_custom_call.1} parent=1 // pred_fallthru
      _
    // Predicated region
    $region34: #{tpu_custom_call.1} parent=1 // pred_check
      _
    $region35: #{tpu_custom_call.1} parent=1 // pred_check_branch
      %137 = sbr.rel (0) target = $region37
    $region36: #{tpu_custom_call.1} parent=1 // pred_region
      %s139 = ssub.s32 256, 256
      %140 = vsyncadd [#allocation5], %s139
      %s141 = sshll.u32 [#allocation9], 4
      %s142 = int_to_ptr.vmem [resolvable:$true] %s141
      %147 = dma.vmem_to_hbm [thread:$0]  %s142, 256, %s3, [#allocation5], 128, 128, 8
    $region37: #{tpu_custom_call.1} parent=1 // pred_fallthru
      _
    // Predicated region
    $region38: #{tpu_custom_call.1} parent=1 // pred_check
      _
    $region39: #{tpu_custom_call.1} parent=1 // pred_check_branch
      %149 = sbr.rel (0) target = $region41
    $region40: #{tpu_custom_call.1} parent=1 // pred_region
      %150 = dma.done [#allocation5], 256
    $region41: #{tpu_custom_call.1} parent=1 // pred_fallthru
      _
    %151 = vsyncpa [#allocation4], 1
    %152 = vsyncpa [#allocation7], 1
    %153 = vsyncpa [#allocation5], 1

</llo_original>
